<compile_context>
chip_gen: v7x
topology: tpu7x:2x2x1
jax: 0.10.0
libtpu: 0.0.40
codegen_flags: <defaults>
</compile_context>

<pallas_src>
import jax
import jax.numpy as jnp
from jax.experimental import pallas as pl
from jax.experimental.pallas import tpu as pltpu

NEG_SLOPE_GAT = 0.2     # GraphAttentionLayer alpha
NEG_SLOPE_ENC = 0.01    # nn.LeakyReLU default negative_slope
BN_EPS = 1e-5
NEG_BIG = -9.0e15       # adjacency mask value (matches the PyTorch -9e15)
PAD_NEG = -1.0e9        # bias for lane-padded softmax logits (exp -> exactly 0)
LANE = 128
TILE_B_MAX = 2048       # upper bound on pixel rows per grid step

_VMEM = pl.BlockSpec(memory_space=pltpu.MemorySpace.VMEM)
_SMEM = pl.BlockSpec(memory_space=pltpu.MemorySpace.SMEM)


def _round_up(x, m):
    return ((x + m - 1) // m) * m


# ----------------------------------------------------------------------------
# Kernel 1: GraphAttentionLayer, attention row i-1 only, + first-layer bias fold.
# All work is O(N*band): no (N,N) tensor is materialized anywhere.
# ----------------------------------------------------------------------------
def _gat_bias_kernel(idx_ref, x_ref, adjc_ref, w_ref, a1_ref, a2_ref,
                     w1b_ref, b1_ref, out_ref):
    n = x_ref.shape[0]

    # h = X @ W                                           (N, F)  -- needed in full
    h = jnp.dot(x_ref[...], w_ref[...], preferred_element_type=jnp.float32)

    # e[i-1, j] = leaky_relu(a1 . h[i-1] + a2 . h[j])  (row i-1 of the GAT logits)
    f1 = jnp.dot(h, a1_ref[...], preferred_element_type=jnp.float32)    # (N, 1)
    f2 = jnp.dot(h, a2_ref[...], preferred_element_type=jnp.float32)    # (N, 1)

    sel = jax.lax.broadcasted_iota(jnp.int32, (n, 1), 0) == idx_ref[0]
    f1_i = jnp.sum(jnp.where(sel, f1, 0.0), axis=0, keepdims=True)      # (1, 1)

    e = f1_i + f2                                                       # (N, 1)
    e = jnp.where(e > 0, e, NEG_SLOPE_GAT * e)                          # LeakyReLU

    # mask with adjacency row i-1 (passed as a column), then softmax over nodes
    logits = jnp.where(adjc_ref[...] > 0, e, NEG_BIG)
    logits = logits - jnp.max(logits, axis=0, keepdims=True)
    p = jnp.exp(logits)
    att = p / jnp.sum(p, axis=0, keepdims=True)                         # (N, 1)
    # dropout(attention) = identity in eval mode

    # h_prime[i-1] = att_row @ h, as broadcast-multiply + sublane reduce (no
    # transpose / no MXU needed for a single row), then ReLU (F.relu in ref).
    x2_row = jnp.maximum(jnp.sum(att * h, axis=0, keepdims=True), 0.0)  # (1, F)

    # effective first-encoder-layer bias: b1_folded + x2[i-1] @ w1[band:, :]_folded
    out_ref[...] = b1_ref[...] + jnp.dot(x2_row, w1b_ref[...],
                                         preferred_element_type=jnp.float32)


def gat_bias_forward(xsup, adj_col, W, a, w1b, b1_base, node_index):
    f_out = W.shape[1]
    a1 = a[:f_out].reshape(f_out, 1)
    a2 = a[f_out:].reshape(f_out, 1)
    idx = jnp.asarray([node_index], dtype=jnp.int32)
    return pl.pallas_call(
        _gat_bias_kernel,
        out_shape=jax.ShapeDtypeStruct((1, w1b.shape[1]), jnp.float32),
        in_specs=[_SMEM] + [_VMEM] * 7,
        out_specs=_VMEM,
    )(idx, xsup, adj_col, W, a1, a2, w1b, b1_base)


# ----------------------------------------------------------------------------
# Kernel 2: encoder -> smooth (softmax) -> decoder, gridded over pixels (B).
# BatchNorm pre-folded; bf16 MXU operands with f32 accumulation; hidden layers
# lane-padded to 128; abundance stored at its true width P.
# ----------------------------------------------------------------------------
def _unmix_kernel(x_ref, w1_ref, b1_ref, w2_ref, b2_ref, w3_ref, b3_ref,
                  ws_ref, bs_ref, wd_ref, abun_ref, recon_ref):
    def enc(x, w_ref, b_ref):
        y = jnp.dot(x.astype(jnp.bfloat16), w_ref[...],
                    preferred_element_type=jnp.float32) + b_ref[...]
        return jnp.where(y > 0, y, NEG_SLOPE_ENC * y)   # Dropout = id (eval), LeakyReLU

    h = enc(x_ref[...], w1_ref, b1_ref)     # (TB, 128)
    h = enc(h, w2_ref, b2_ref)              # (TB, 128) lane-padded from 64 (pad lanes stay 0)
    h = enc(h, w3_ref, b3_ref)              # (TB, 128) lane-padded from 24

    # smooth: Linear(24, P) + Softmax(dim=1); padded logits carry PAD_NEG bias
    z = jnp.dot(h.astype(jnp.bfloat16), ws_ref[...],
                preferred_element_type=jnp.float32) + bs_ref[...]
    z = z - jnp.max(z, axis=1, keepdims=True)
    p = jnp.exp(z)
    abun = p * (1.0 / jnp.sum(p, axis=1, keepdims=True))   # exact normalization
    n_end = abun_ref.shape[1]
    abun_ref[...] = abun[:, :n_end]          # write only the real P endmember lanes

    # decoder: Linear(P, band, bias=False) + ReLU (padded abun lanes are exactly 0)
    recon = jnp.dot(abun.astype(jnp.bfloat16), wd_ref[...],
                    preferred_element_type=jnp.float32)
    recon_ref[...] = jnp.maximum(recon, 0.0)


def unmix_forward(x, w1a, b1_eff, w2, b2, w3, b3, ws, bs, wd, n_end, band_out):
    B, band = x.shape

    # tile_b sizing: amortize the ~0.35us/step overhead with big tiles, stay well
    # inside the v5e 16 MiB default scoped VMEM / v7x 64 MiB physical VMEM, and
    # keep >=2 grid steps when B allows so ("parallel",) can use both v7x TCs.
    row_bytes = 8 * (band + band_out + n_end) + 16 * LANE  # dbl-buffered io blocks + temps
    tile_cap = min(TILE_B_MAX, max(128, ((8 << 20) // row_bytes) & ~7))
    n_rows = _round_up(B, 8)
    tile_b = min(tile_cap, n_rows)
    if n_rows // tile_b < 2 and n_rows >= 16:
        tile_b = _round_up((n_rows + 1) // 2, 8)

    b_pad = _round_up(B, tile_b)
    if b_pad != B:
        x = jnp.pad(x, ((0, b_pad - B), (0, 0)))
    nb = b_pad // tile_b

    def row_spec(feat):
        return pl.BlockSpec((tile_b, feat), lambda b: (b, 0))

    def const_spec(arr):
        return pl.BlockSpec(arr.shape, lambda b: (0, 0))

    abun, recon = pl.pallas_call(
        _unmix_kernel,
        out_shape=(jax.ShapeDtypeStruct((b_pad, n_end), jnp.float32),
                   jax.ShapeDtypeStruct((b_pad, band_out), jnp.float32)),
        grid=(nb,),
        in_specs=[row_spec(band),
                  const_spec(w1a), const_spec(b1_eff),
                  const_spec(w2), const_spec(b2),
                  const_spec(w3), const_spec(b3),
                  const_spec(ws), const_spec(bs),
                  const_spec(wd)],
        out_specs=(row_spec(n_end), row_spec(band_out)),
        compiler_params=pltpu.CompilerParams(
            dimension_semantics=("parallel",),
            vmem_limit_bytes=32 * 1024 * 1024),
    )(x, w1a, b1_eff, w2, b2, w3, b3, ws, bs, wd)

    return abun[:B], recon[:B, :band]


# ----------------------------------------------------------------------------
# Wrapper-side weight preparation: fold BatchNorm (eval) into weights/biases,
# split w1 around the concat boundary, zero-pad narrow layers to 128 lanes,
# cast the kernel-2 matmul weights to bf16 (biases stay f32).
# ----------------------------------------------------------------------------
def _prepare_unmix_weights(params, band, band_out):
    def fold(w, b, g, beta, m, v):
        s = g * jax.lax.rsqrt(v + BN_EPS)
        return w * s[None, :], b * s + (beta - m * s)

    w1, b1 = fold(params["w1"], params["b1"], params["bn1_g"], params["bn1_b"],
                  params["bn1_m"], params["bn1_v"])
    w2, b2 = fold(params["w2"], params["b2"], params["bn2_g"], params["bn2_b"],
                  params["bn2_m"], params["bn2_v"])
    w3, b3 = fold(params["w3"], params["b3"], params["bn3_g"], params["bn3_b"],
                  params["bn3_m"], params["bn3_v"])

    # split the first layer along the (inputlocal | broadcast graph row) concat
    w1a = w1[:band]                      # acts on inputlocal      (band, 128)
    w1b = w1[band:]                      # acts on x2[i-1]         (band, 128), kept f32
    b1_base = b1.reshape(1, -1)

    # lane-dense padding of the 64 / 24 / P wide layers up to multiples of 128
    h2 = _round_up(w2.shape[1], LANE)
    h3 = _round_up(w3.shape[1], LANE)
    hp = _round_up(params["ws"].shape[1], LANE)

    w2p = jnp.pad(w2, ((0, 0), (0, h2 - w2.shape[1])))
    b2p = jnp.pad(b2, (0, h2 - b2.shape[0])).reshape(1, -1)

    w3p = jnp.pad(w3, ((0, h2 - w3.shape[0]), (0, h3 - w3.shape[1])))
    b3p = jnp.pad(b3, (0, h3 - b3.shape[0])).reshape(1, -1)

    ws, bs = params["ws"], params["bs"]
    wsp = jnp.pad(ws, ((0, h3 - ws.shape[0]), (0, hp - ws.shape[1])))
    bsp = jnp.concatenate(
        [bs, jnp.full((hp - bs.shape[0],), PAD_NEG, jnp.float32)]).reshape(1, -1)

    wd = params["wd"]
    wdp = jnp.pad(wd, ((0, hp - wd.shape[0]), (0, band_out - wd.shape[1])))

    bf = lambda w: w.astype(jnp.bfloat16)    # MXU operands; f32 accumulation in-kernel
    return (bf(w1a), w1b, b1_base, bf(w2p), b2p, bf(w3p), b3p,
            bf(wsp), bsp, bf(wdp))


# ----------------------------------------------------------------------------
# Full forward (mirrors multiStageUnmixing.forward)
# ----------------------------------------------------------------------------
def multi_stage_unmixing_forward(params, x, xsup, A, inputlocal, i):
    del x  # overwritten in the PyTorch forward before ever being read
    band = inputlocal.shape[1]
    n_nodes = xsup.shape[0]
    n_end = params["ws"].shape[1]

    if isinstance(i, int):
        assert 1 <= i <= n_nodes, f"node index i-1={i-1} out of range [0, {n_nodes})"
    node_index = i - 1

    # recon lane padding: only when the extra HBM write bytes are modest (<=50%)
    band_pad = _round_up(band, LANE)
    band_out = band_pad if (band_pad != band and 2 * band_pad <= 3 * band) else band

    (w1a, w1b, b1_base, w2p, b2p, w3p, b3p,
     wsp, bsp, wdp) = _prepare_unmix_weights(params, band, band_out)

    # only adjacency ROW i-1 is ever needed; slice it here (N values, not N*N)
    adj_col = jax.lax.dynamic_slice(A, (node_index, 0), (1, n_nodes)).reshape(n_nodes, 1)

    # graph stage folded directly into the first encoder layer's effective bias
    b1_eff = gat_bias_forward(xsup, adj_col, params["gat_W"], params["gat_a"],
                              w1b, b1_base, node_index)

    abun, recon = unmix_forward(inputlocal, w1a, b1_eff, w2p, b2p, w3p, b3p,
                                wsp, bsp, wdp, n_end, band_out)
    return abun, recon


# ----------------------------------------------------------------------------
# Deterministic parameter initialization (xavier-uniform, PyTorch-style BN init)
# ----------------------------------------------------------------------------
def init_params(key, band, endmember_number):
    def xavier(k, shape):
        fan_in, fan_out = shape[0], shape[1]
        limit = jnp.sqrt(6.0 / (fan_in + fan_out))
        return jax.random.uniform(k, shape, jnp.float32, -limit, limit)

    ks = jax.random.split(key, 7)
    params = {
        "gat_W": xavier(ks[0], (band, band)),
        "gat_a": xavier(ks[1], (2 * band, 1)),
        "w1": xavier(ks[2], (2 * band, 128)), "b1": jnp.zeros((128,), jnp.float32),
        "w2": xavier(ks[3], (128, 64)),       "b2": jnp.zeros((64,), jnp.float32),
        "w3": xavier(ks[4], (64, 24)),        "b3": jnp.zeros((24,), jnp.float32),
        "ws": xavier(ks[5], (24, endmember_number)),
        "bs": jnp.zeros((endmember_number,), jnp.float32),
        "wd": xavier(ks[6], (endmember_number, band)),
    }
    for name, dim in (("bn1", 128), ("bn2", 64), ("bn3", 24)):
        params[f"{name}_g"] = jnp.ones((dim,), jnp.float32)
        params[f"{name}_b"] = jnp.zeros((dim,), jnp.float32)
        params[f"{name}_m"] = jnp.zeros((dim,), jnp.float32)
        params[f"{name}_v"] = jnp.ones((dim,), jnp.float32)
    return params


if __name__ == "__main__":
    band_number = 16        # band_Number
    endmember_number = 4
    N_nodes = 8             # graph nodes / superpixels
    B_pixels = 32           # rows of inputlocal
    idx_i = 3               # `i` argument (uses node i-1)

    key = jax.random.PRNGKey(0)
    kp, kx, ksup, ka, kloc = jax.random.split(key, 5)

    params = init_params(kp, band_number, endmember_number)

    x = jax.random.normal(kx, (B_pixels, band_number), jnp.float32)   # unused by forward
    xsup = jax.random.normal(ksup, (N_nodes, band_number), jnp.float32)
    A = (jax.random.uniform(ka, (N_nodes, N_nodes)) > 0.5).astype(jnp.float32)
    A = jnp.maximum(A, jnp.eye(N_nodes, dtype=jnp.float32))           # self-loops
    inputlocal = jax.random.normal(kloc, (B_pixels, band_number), jnp.float32)

    abun, recon = multi_stage_unmixing_forward(params, x, xsup, A, inputlocal, idx_i)
    jax.block_until_ready((abun, recon))

    assert abun.shape == (B_pixels, endmember_number)
    assert recon.shape == (B_pixels, band_number)
    assert bool(jnp.all(jnp.isfinite(abun))) and bool(jnp.all(jnp.isfinite(recon)))
    assert bool(jnp.all(abun >= 0.0)) and bool(jnp.all(recon >= 0.0))
    # abundances are an exactly-normalized softmax -> rows sum to ~1
    assert bool(jnp.allclose(jnp.sum(abun, axis=1), 1.0, atol=1e-3))

    print("KERNEL_OK")
</pallas_src>

<mosaic_0001>
module attributes {stable_mosaic.version = 11 : i64} {
  func.func @_gat_bias_kernel(%arg0: memref<1xi32, #tpu.memory_space<smem>>, %arg1: memref<8x16xf32, #tpu.memory_space<vmem>>, %arg2: memref<8x1xf32, #tpu.memory_space<vmem>>, %arg3: memref<16x16xf32, #tpu.memory_space<vmem>>, %arg4: memref<16x1xf32, #tpu.memory_space<vmem>>, %arg5: memref<16x1xf32, #tpu.memory_space<vmem>>, %arg6: memref<16x128xf32, #tpu.memory_space<vmem>>, %arg7: memref<1x128xf32, #tpu.memory_space<vmem>>, %arg8: memref<1x128xf32, #tpu.memory_space<vmem>>) attributes {dimension_semantics = [], scalar_prefetch = 0 : i64, scratch_operands = 0 : i64, tpu.core_type = #tpu.core_type<tc>} {
    %c0 = arith.constant 0 : index
    %c0_0 = arith.constant 0 : index
    %0 = vector.load %arg1[%c0, %c0_0] : memref<8x16xf32, #tpu.memory_space<vmem>>, vector<8x16xf32>
    %c0_1 = arith.constant 0 : index
    %c0_2 = arith.constant 0 : index
    %1 = vector.load %arg3[%c0_1, %c0_2] : memref<16x16xf32, #tpu.memory_space<vmem>>, vector<16x16xf32>
    %cst = arith.constant dense<0.000000e+00> : vector<8x16xf32>
    %2 = tpu.matmul %0, %1, %cst {dimension_numbers = #tpu.dot_dimension_numbers<[1], [0], [0], [1], [0, 0, 1, 1], [], []>} : vector<8x16xf32>, vector<16x16xf32>, vector<8x16xf32> -> vector<8x16xf32>
    %c0_3 = arith.constant 0 : index
    %c0_4 = arith.constant 0 : index
    %3 = vector.load %arg4[%c0_3, %c0_4] : memref<16x1xf32, #tpu.memory_space<vmem>>, vector<16x1xf32>
    %cst_5 = arith.constant dense<0.000000e+00> : vector<8x1xf32>
    %4 = tpu.matmul %2, %3, %cst_5 {dimension_numbers = #tpu.dot_dimension_numbers<[1], [0], [0], [1], [0, 0, 1, 1], [], []>} : vector<8x16xf32>, vector<16x1xf32>, vector<8x1xf32> -> vector<8x1xf32>
    %c0_6 = arith.constant 0 : index
    %c0_7 = arith.constant 0 : index
    %5 = vector.load %arg5[%c0_6, %c0_7] : memref<16x1xf32, #tpu.memory_space<vmem>>, vector<16x1xf32>
    %cst_8 = arith.constant dense<0.000000e+00> : vector<8x1xf32>
    %6 = tpu.matmul %2, %5, %cst_8 {dimension_numbers = #tpu.dot_dimension_numbers<[1], [0], [0], [1], [0, 0, 1, 1], [], []>} : vector<8x16xf32>, vector<16x1xf32>, vector<8x1xf32> -> vector<8x1xf32>
    %7 = tpu.iota {dimensions = array<i32: 0>} : vector<8x1xi32>
    %c0_9 = arith.constant 0 : index
    %8 = memref.load %arg0[%c0_9] : memref<1xi32, #tpu.memory_space<smem>>
    %9 = vector.broadcast %8 : i32 to vector<8x1xi32>
    %10 = arith.cmpi eq, %7, %9 : vector<8x1xi32>
    %cst_10 = arith.constant 0.000000e+00 : f32
    %11 = vector.broadcast %cst_10 : f32 to vector<8x1xf32>
    %12 = arith.select %10, %4, %11 : vector<8x1xi1>, vector<8x1xf32>
    %cst_11 = arith.constant dense<0.000000e+00> : vector<1xf32>
    %13 = vector.multi_reduction <add>, %12, %cst_11 [0] : vector<8x1xf32> to vector<1xf32>
    %14 = vector.shape_cast %13 : vector<1xf32> to vector<1x1xf32>
    %15 = vector.broadcast %14 : vector<1x1xf32> to vector<8x1xf32>
    %16 = arith.addf %15, %6 : vector<8x1xf32>
    %cst_12 = arith.constant 0.000000e+00 : f32
    %17 = vector.broadcast %cst_12 : f32 to vector<8x1xf32>
    %18 = arith.cmpf ogt, %16, %17 : vector<8x1xf32>
    %cst_13 = arith.constant 2.000000e-01 : f32
    %19 = vector.broadcast %cst_13 : f32 to vector<8x1xf32>
    %20 = arith.mulf %19, %16 : vector<8x1xf32>
    %21 = arith.select %18, %16, %20 : vector<8x1xi1>, vector<8x1xf32>
    %c0_14 = arith.constant 0 : index
    %c0_15 = arith.constant 0 : index
    %22 = vector.load %arg2[%c0_14, %c0_15] : memref<8x1xf32, #tpu.memory_space<vmem>>, vector<8x1xf32>
    %cst_16 = arith.constant 0.000000e+00 : f32
    %23 = vector.broadcast %cst_16 : f32 to vector<8x1xf32>
    %24 = arith.cmpf ogt, %22, %23 : vector<8x1xf32>
    %cst_17 = arith.constant -9.000000e+15 : f32
    %25 = vector.broadcast %cst_17 : f32 to vector<8x1xf32>
    %26 = arith.select %24, %21, %25 : vector<8x1xi1>, vector<8x1xf32>
    %cst_18 = arith.constant dense<0xFF800000> : vector<1xf32>
    %27 = vector.multi_reduction <maximumf>, %26, %cst_18 [0] : vector<8x1xf32> to vector<1xf32>
    %28 = vector.shape_cast %27 : vector<1xf32> to vector<1x1xf32>
    %29 = vector.broadcast %28 : vector<1x1xf32> to vector<8x1xf32>
    %30 = arith.subf %26, %29 : vector<8x1xf32>
    %31 = math.exp %30 : vector<8x1xf32>
    %cst_19 = arith.constant dense<0.000000e+00> : vector<1xf32>
    %32 = vector.multi_reduction <add>, %31, %cst_19 [0] : vector<8x1xf32> to vector<1xf32>
    %33 = vector.shape_cast %32 : vector<1xf32> to vector<1x1xf32>
    %34 = vector.broadcast %33 : vector<1x1xf32> to vector<8x1xf32>
    %35 = arith.divf %31, %34 : vector<8x1xf32>
    %36 = vector.broadcast %35 : vector<8x1xf32> to vector<8x16xf32>
    %37 = arith.mulf %36, %2 : vector<8x16xf32>
    %cst_20 = arith.constant dense<0.000000e+00> : vector<16xf32>
    %38 = vector.multi_reduction <add>, %37, %cst_20 [0] : vector<8x16xf32> to vector<16xf32>
    %39 = vector.shape_cast %38 : vector<16xf32> to vector<1x16xf32>
    %cst_21 = arith.constant 0.000000e+00 : f32
    %40 = vector.broadcast %cst_21 : f32 to vector<1x16xf32>
    %41 = arith.maximumf %39, %40 : vector<1x16xf32>
    %c0_22 = arith.constant 0 : index
    %c0_23 = arith.constant 0 : index
    %42 = vector.load %arg7[%c0_22, %c0_23] : memref<1x128xf32, #tpu.memory_space<vmem>>, vector<1x128xf32>
    %c0_24 = arith.constant 0 : index
    %c0_25 = arith.constant 0 : index
    %43 = vector.load %arg6[%c0_24, %c0_25] : memref<16x128xf32, #tpu.memory_space<vmem>>, vector<16x128xf32>
    %cst_26 = arith.constant dense<0.000000e+00> : vector<1x128xf32>
    %44 = tpu.matmul %41, %43, %cst_26 {dimension_numbers = #tpu.dot_dimension_numbers<[1], [0], [0], [1], [0, 0, 1, 1], [], []>} : vector<1x16xf32>, vector<16x128xf32>, vector<1x128xf32> -> vector<1x128xf32>
    %45 = arith.addf %42, %44 : vector<1x128xf32>
    %c0_27 = arith.constant 0 : index
    %c0_28 = arith.constant 0 : index
    %46 = vector.load %arg8[%c0_27, %c0_28] : memref<1x128xf32, #tpu.memory_space<vmem>>, vector<1x128xf32>
    tpu.vector_store %arg8[%c0_27, %c0_28], %45 {strides = array<i32>} : memref<1x128xf32, #tpu.memory_space<vmem>>, vector<1x128xf32>,
    return
  }
}

</mosaic_0001>

<llo_original>
// kernel: tpu_custom_call.1
$region0: #{tpu_custom_call.1}
  #allocation0 [shape = 'u32[]', space=smem, size = 0x4, offset = 0x4, fixed_abs, tag = 'smem constant byte address 0x4 - core index']
  #allocation1 [shape = 'u32[144,128]{1,0:T(1,128)}', space=vmem, size = 0x12000, scoped, tag = 'internal scratch']
  #allocation2 [shape = 's32[1]{0:T(128)S(6)}', space=smem, size = 0x200, scoped, tag = 'scoped memory for tpu_custom_call.1']
  %s0 = inlined_call_operand.<no memory space> [shape: s32[1], index: 0, kind: input, shape index: {}]
  %s1 = inlined_call_operand.vmem [shape: f32[8,16], index: 1, kind: input, shape index: {}]
  %s2 = inlined_call_operand.vmem [shape: f32[8,1], index: 2, kind: input, shape index: {}]
  %s3 = inlined_call_operand.vmem [shape: f32[16,16], index: 3, kind: input, shape index: {}]
  %s4 = inlined_call_operand.vmem [shape: f32[16,1], index: 4, kind: input, shape index: {}]
  %s5 = inlined_call_operand.vmem [shape: f32[16,1], index: 5, kind: input, shape index: {}]
  %s6 = inlined_call_operand.vmem [shape: f32[16,128], index: 6, kind: input, shape index: {}]
  %s7 = inlined_call_operand.vmem [shape: f32[1,128], index: 7, kind: input, shape index: {}]
  %s8 = inlined_call_operand.hbm [shape: f32[1,128], index: 8, kind: output, shape index: {}]
  %s9 = sld [smem:[#allocation0]]
  $region42: #{tpu_custom_call.1} parent=0
    _
  %s11 = ssub.s32 1, %s9
  %s12 = scalar_select 0, %s11, %s9
  %13 = sst [smem:[#allocation2]] %s0
  $region1: #{tpu_custom_call.1} parent=0
    #allocation3 [shape = 'u8[512]{0}', space=vmem, size = 0x400, scoped, tag = 'output window, operand 0, single buffered']
    #allocation4 [shape = 's32[1]{0}', space=sflag, size = 0x4, scoped, tag = 'scoped memory for tpu_custom_call.1']
    %14 = vsyncpa [#allocation4], 0
    // Predicated region
    $region2: #{tpu_custom_call.1} parent=1 // pred_check
      _
    $region3: #{tpu_custom_call.1} parent=1 // pred_check_branch
      %16 = sbr.rel (0) target = $region5
    $region4: #{tpu_custom_call.1} parent=1 // pred_region
      _
    $region5: #{tpu_custom_call.1} parent=1 // pred_fallthru
      _
    // Predicated region
    $region6: #{tpu_custom_call.1} parent=1 // pred_check
      _
    $region7: #{tpu_custom_call.1} parent=1 // pred_check_branch
      %18 = sbr.rel (0) target = $region9
    $region8: #{tpu_custom_call.1} parent=1 // pred_region
      _
    $region9: #{tpu_custom_call.1} parent=1 // pred_fallthru
      _
    // Predicated region
    $region10: #{tpu_custom_call.1} parent=1 // pred_check
      _
    $region11: #{tpu_custom_call.1} parent=1 // pred_check_branch
      %20 = sbr.rel (0) target = $region13
    $region12: #{tpu_custom_call.1} parent=1 // pred_region
      _
    $region13: #{tpu_custom_call.1} parent=1 // pred_fallthru
      _
    // Predicated region
    $region14: #{tpu_custom_call.1} parent=1 // pred_check
      _
    $region15: #{tpu_custom_call.1} parent=1 // pred_check_branch
      %22 = sbr.rel (0) target = $region17
    $region16: #{tpu_custom_call.1} parent=1 // pred_region
      _
    $region17: #{tpu_custom_call.1} parent=1 // pred_fallthru
      _
    // Predicated region
    $region18: #{tpu_custom_call.1} parent=1 // pred_check
      _
    $region19: #{tpu_custom_call.1} parent=1 // pred_check_branch
      %24 = sbr.rel (0) target = $region21
    $region20: #{tpu_custom_call.1} parent=1 // pred_region
      _
    $region21: #{tpu_custom_call.1} parent=1 // pred_fallthru
      _
    // Predicated region
    $region22: #{tpu_custom_call.1} parent=1 // pred_check
      _
    $region23: #{tpu_custom_call.1} parent=1 // pred_check_branch
      %26 = sbr.rel (0) target = $region25
    $region24: #{tpu_custom_call.1} parent=1 // pred_region
      _
    $region25: #{tpu_custom_call.1} parent=1 // pred_fallthru
      _
    // Predicated region
    $region26: #{tpu_custom_call.1} parent=1 // pred_check
      _
    $region27: #{tpu_custom_call.1} parent=1 // pred_check_branch
      %28 = sbr.rel (0) target = $region29
    $region28: #{tpu_custom_call.1} parent=1 // pred_region
      _
    $region29: #{tpu_custom_call.1} parent=1 // pred_fallthru
      _
    // Predicated region
    $region30: #{tpu_custom_call.1} parent=1 // pred_check
      _
    $region31: #{tpu_custom_call.1} parent=1 // pred_check_branch
      %30 = sbr.rel (0) target = $region33
    $region32: #{tpu_custom_call.1} parent=1 // pred_region
      _
    $region33: #{tpu_custom_call.1} parent=1 // pred_fallthru
      _
    %v31 = vld [vmem:[%s1] sm:$0xff]
    %v32 = vld [vmem:[%s3] sm:$0xff]
    %v33 = vld [vmem:[%s3 + $0x8] sm:$0xff]
    %vm34 = vcmask 130048
    %v36 = vsel %vm34, %v31, 0
    %38 = vmatprep.subr.mxu0 0.0
    %39 = vmatpush1.msra.mxu0 %v32
    %40 = vmatprep.subr.mxu0 0.0
    %41 = vmatpush1.msra.mxu0 %v33
    %42 = vmatprep.subr.mxu0 0.0
    %43 = vmatpush1.msra.mxu0 0.0
    %44 = vmatprep.subr.mxu0 0.0
    %45 = vmatpush1.msra.mxu0 0.0
    %46 = vmatprep.subr.mxu0 0.0
    %47 = vmatpush1.msra.mxu0 0.0
    %48 = vmatprep.subr.mxu0 0.0
    %49 = vmatpush1.msra.mxu0 0.0
    %50 = vmatprep.subr.mxu0 0.0
    %51 = vmatpush1.msra.mxu0 0.0
    %52 = vmatprep.subr.mxu0 0.0
    %53 = vmatpush1.msra.mxu0 0.0
    %54 = vmatprep.subr.mxu0 0.0
    %55 = vmatpush1.msra.mxu0 0.0
    %56 = vmatprep.subr.mxu0 0.0
    %57 = vmatpush1.msra.mxu0 0.0
    %58 = vmatprep.subr.mxu0 0.0
    %59 = vmatpush1.msra.mxu0 0.0
    %60 = vmatprep.subr.mxu0 0.0
    %61 = vmatpush1.msra.mxu0 0.0
    %62 = vmatprep.subr.mxu0 0.0
    %63 = vmatpush1.msra.mxu0 0.0
    %64 = vmatprep.subr.mxu0 0.0
    %65 = vmatpush1.msra.mxu0 0.0
    %66 = vmatprep.subr.mxu0 0.0
    %67 = vmatpush1.msra.mxu0 0.0
    %68 = vmatprep.subr.mxu0 0.0
    %69 = vmatpush1.msra.mxu0 0.0
    %70 = vmatprep.subr.mxu0 0.0
    %71 = vmatpush1.msra.mxu0 0.0
    %72 = vmatprep.subr.mxu0 0.0
    %73 = vmatpush1.msra.mxu0 0.0
    %74 = vmatprep.subr.mxu0 0.0
    %75 = vmatpush1.msra.mxu0 0.0
    %76 = vmatprep.subr.mxu0 0.0
    %77 = vmatpush1.msra.mxu0 0.0
    %78 = vmatprep.subr.mxu0 0.0
    %79 = vmatpush1.msra.mxu0 0.0
    %80 = vmatprep.subr.mxu0 0.0
    %81 = vmatpush1.msra.mxu0 0.0
    %82 = vmatprep.subr.mxu0 0.0
    %83 = vmatpush1.msra.mxu0 0.0
    %84 = vmatprep.subr.mxu0 0.0
    %85 = vmatpush1.msra.mxu0 0.0
    %86 = vmatprep.subr.mxu0 0.0
    %87 = vmatpush1.msra.mxu0 0.0
    %88 = vmatprep.subr.mxu0 0.0
    %89 = vmatpush1.msra.mxu0 0.0
    %90 = vmatprep.subr.mxu0 0.0
    %91 = vmatpush1.msra.mxu0 0.0
    %92 = vmatprep.subr.mxu0 0.0
    %93 = vmatpush1.msra.mxu0 0.0
    %94 = vmatprep.subr.mxu0 0.0
    %95 = vmatpush1.msra.mxu0 0.0
    %96 = vmatprep.subr.mxu0 0.0
    %97 = vmatpush1.msra.mxu0 0.0
    %98 = vmatprep.subr.mxu0 0.0
    %99 = vmatpush1.msra.mxu0 0.0
    %100 = vmatprep.subr.mxu0 0.0
    %101 = vmatpush1.msra.mxu0 0.0
    %102 = vmatprep.mubr.f32.mxu0 0.0
    %103 = vmatmul.mubr.f32.gmra.mrb[0].mxu0 %v36
    %v104 = vpop.f32.mrb[0].mxu0
    %v105 = vadd.f32 0.0, %v104
    %v106 = vpop.f32.mrb[0].mxu0
    %107 = vdwg.mxu0
    %v108 = vld [vmem:[%s4] sm:$0xff]
    %v109 = vld [vmem:[%s4 + $0x8] sm:$0xff]
    %v111 = vsel %vm34, %v105, 0
    %113 = vmatprep.subr.mxu0 0.0
    %114 = vmatpush1.msra.mxu0 %v108
    %115 = vmatprep.subr.mxu0 0.0
    %116 = vmatpush1.msra.mxu0 %v109
    %117 = vmatprep.subr.mxu0 0.0
    %118 = vmatpush1.msra.mxu0 0.0
    %119 = vmatprep.subr.mxu0 0.0
    %120 = vmatpush1.msra.mxu0 0.0
    %121 = vmatprep.subr.mxu0 0.0
    %122 = vmatpush1.msra.mxu0 0.0
    %123 = vmatprep.subr.mxu0 0.0
    %124 = vmatpush1.msra.mxu0 0.0
    %125 = vmatprep.subr.mxu0 0.0
    %126 = vmatpush1.msra.mxu0 0.0
    %127 = vmatprep.subr.mxu0 0.0
    %128 = vmatpush1.msra.mxu0 0.0
    %129 = vmatprep.subr.mxu0 0.0
    %130 = vmatpush1.msra.mxu0 0.0
    %131 = vmatprep.subr.mxu0 0.0
    %132 = vmatpush1.msra.mxu0 0.0
    %133 = vmatprep.subr.mxu0 0.0
    %134 = vmatpush1.msra.mxu0 0.0
    %135 = vmatprep.subr.mxu0 0.0
    %136 = vmatpush1.msra.mxu0 0.0
    %137 = vmatprep.subr.mxu0 0.0
    %138 = vmatpush1.msra.mxu0 0.0
    %139 = vmatprep.subr.mxu0 0.0
    %140 = vmatpush1.msra.mxu0 0.0
    %141 = vmatprep.subr.mxu0 0.0
    %142 = vmatpush1.msra.mxu0 0.0
    %143 = vmatprep.subr.mxu0 0.0
    %144 = vmatpush1.msra.mxu0 0.0
    %145 = vmatprep.subr.mxu0 0.0
    %146 = vmatpush1.msra.mxu0 0.0
    %147 = vmatprep.subr.mxu0 0.0
    %148 = vmatpush1.msra.mxu0 0.0
    %149 = vmatprep.subr.mxu0 0.0
    %150 = vmatpush1.msra.mxu0 0.0
    %151 = vmatprep.subr.mxu0 0.0
    %152 = vmatpush1.msra.mxu0 0.0
    %153 = vmatprep.subr.mxu0 0.0
    %154 = vmatpush1.msra.mxu0 0.0
    %155 = vmatprep.subr.mxu0 0.0
    %156 = vmatpush1.msra.mxu0 0.0
    %157 = vmatprep.subr.mxu0 0.0
    %158 = vmatpush1.msra.mxu0 0.0
    %159 = vmatprep.subr.mxu0 0.0
    %160 = vmatpush1.msra.mxu0 0.0
    %161 = vmatprep.subr.mxu0 0.0
    %162 = vmatpush1.msra.mxu0 0.0
    %163 = vmatprep.subr.mxu0 0.0
    %164 = vmatpush1.msra.mxu0 0.0
    %165 = vmatprep.subr.mxu0 0.0
    %166 = vmatpush1.msra.mxu0 0.0
    %167 = vmatprep.subr.mxu0 0.0
    %168 = vmatpush1.msra.mxu0 0.0
    %169 = vmatprep.subr.mxu0 0.0
    %170 = vmatpush1.msra.mxu0 0.0
    %171 = vmatprep.subr.mxu0 0.0
    %172 = vmatpush1.msra.mxu0 0.0
    %173 = vmatprep.subr.mxu0 0.0
    %174 = vmatpush1.msra.mxu0 0.0
    %175 = vmatprep.subr.mxu0 0.0
    %176 = vmatpush1.msra.mxu0 0.0
    %177 = vmatprep.mubr.f32.mxu0 0.0
    %178 = vmatmul.mubr.f32.gmra.mrb[0].mxu0 %v111
    %v179 = vpop.f32.mrb[0].mxu0
    %v180 = vadd.f32 0.0, %v179
    %v181 = vpop.f32.mrb[0].mxu0
    %182 = vdwg.mxu0
    %v183 = vld [vmem:[%s5] sm:$0xff]
    %v184 = vld [vmem:[%s5 + $0x8] sm:$0xff]
    %185 = vmatprep.subr.mxu0 0.0
    %186 = vmatpush1.msra.mxu0 %v183
    %187 = vmatprep.subr.mxu0 0.0
    %188 = vmatpush1.msra.mxu0 %v184
    %189 = vmatprep.subr.mxu0 0.0
    %190 = vmatpush1.msra.mxu0 0.0
    %191 = vmatprep.subr.mxu0 0.0
    %192 = vmatpush1.msra.mxu0 0.0
    %193 = vmatprep.subr.mxu0 0.0
    %194 = vmatpush1.msra.mxu0 0.0
    %195 = vmatprep.subr.mxu0 0.0
    %196 = vmatpush1.msra.mxu0 0.0
    %197 = vmatprep.subr.mxu0 0.0
    %198 = vmatpush1.msra.mxu0 0.0
    %199 = vmatprep.subr.mxu0 0.0
    %200 = vmatpush1.msra.mxu0 0.0
    %201 = vmatprep.subr.mxu0 0.0
    %202 = vmatpush1.msra.mxu0 0.0
    %203 = vmatprep.subr.mxu0 0.0
    %204 = vmatpush1.msra.mxu0 0.0
    %205 = vmatprep.subr.mxu0 0.0
    %206 = vmatpush1.msra.mxu0 0.0
    %207 = vmatprep.subr.mxu0 0.0
    %208 = vmatpush1.msra.mxu0 0.0
    %209 = vmatprep.subr.mxu0 0.0
    %210 = vmatpush1.msra.mxu0 0.0
    %211 = vmatprep.subr.mxu0 0.0
    %212 = vmatpush1.msra.mxu0 0.0
    %213 = vmatprep.subr.mxu0 0.0
    %214 = vmatpush1.msra.mxu0 0.0
    %215 = vmatprep.subr.mxu0 0.0
    %216 = vmatpush1.msra.mxu0 0.0
    %217 = vmatprep.subr.mxu0 0.0
    %218 = vmatpush1.msra.mxu0 0.0
    %219 = vmatprep.subr.mxu0 0.0
    %220 = vmatpush1.msra.mxu0 0.0
    %221 = vmatprep.subr.mxu0 0.0
    %222 = vmatpush1.msra.mxu0 0.0
    %223 = vmatprep.subr.mxu0 0.0
    %224 = vmatpush1.msra.mxu0 0.0
    %225 = vmatprep.subr.mxu0 0.0
    %226 = vmatpush1.msra.mxu0 0.0
    %227 = vmatprep.subr.mxu0 0.0
    %228 = vmatpush1.msra.mxu0 0.0
    %229 = vmatprep.subr.mxu0 0.0
    %230 = vmatpush1.msra.mxu0 0.0
    %231 = vmatprep.subr.mxu0 0.0
    %232 = vmatpush1.msra.mxu0 0.0
    %233 = vmatprep.subr.mxu0 0.0
    %234 = vmatpush1.msra.mxu0 0.0
    %235 = vmatprep.subr.mxu0 0.0
    %236 = vmatpush1.msra.mxu0 0.0
    %237 = vmatprep.subr.mxu0 0.0
    %238 = vmatpush1.msra.mxu0 0.0
    %239 = vmatprep.subr.mxu0 0.0
    %240 = vmatpush1.msra.mxu0 0.0
    %241 = vmatprep.subr.mxu0 0.0
    %242 = vmatpush1.msra.mxu0 0.0
    %243 = vmatprep.subr.mxu0 0.0
    %244 = vmatpush1.msra.mxu0 0.0
    %245 = vmatprep.subr.mxu0 0.0
    %246 = vmatpush1.msra.mxu0 0.0
    %247 = vmatprep.subr.mxu0 0.0
    %248 = vmatpush1.msra.mxu0 0.0
    %249 = vmatprep.mubr.f32.mxu0 0.0
    %250 = vmatmul.mubr.f32.gmra.mrb[0].mxu0 %v111
    %v251 = vpop.f32.mrb[0].mxu0
    %v252 = vadd.f32 0.0, %v251
    %v253 = vpop.f32.mrb[0].mxu0
    %254 = vdwg.mxu0
    %v255 = vlaneseq
    %v256 = vshrl.u32 %v255, 7
    %s257 = sld [smem:[#allocation2]]
    %v258 = vstv %s257
    %vm259 = vcmp.eq.s32.totalorder %v256, %v258
    %v260 = vsel %vm259, %v180, 0.0
    %vm261 = vcmask 7168
    %v262 = vsel %vm261, %v260, 0.0
    %v263 = vrot.slane %v262, 4
    %v264 = vadd.f32 %v262, %v263
    %v265 = vrot.slane %v264, 2
    %v266 = vadd.f32 %v264, %v265
    %v267 = vrot.slane %v266, 1
    %v268 = vadd.f32 %v266, %v267
    %v269 = vadd.f32 %v268, %v252
    %vm270 = vcmp.gt.f32.partialorder %v269, 0.0
    %v271 = vmul.f32 %v269, 0.2
    %v272 = vsel %vm270, %v269, %v271
    %v273 = vld [vmem:[%s2] sm:$0xff]
    %vm274 = vcmp.gt.f32.partialorder %v273, 0.0
    %v275 = vsel %vm274, %v272, -9e+15
    %v276 = vsel %vm261, %v275, -inf
    %v277 = vrot.slane %v276, 4
    %v278 = vmax.f32 %v276, %v277
    %v279 = vrot.slane %v278, 2
    %v280 = vmax.f32 %v278, %v279
    %v281 = vrot.slane %v280, 1
    %v282 = vmax.f32 %v280, %v281
    %v283 = vsub.f32 %v275, %v282
    %v284 = vmul.f32 %v283, 1.442695
    %v285 = vpow.pop %v284
    %v286 = vsel %vm261, %v285, 0.0
    %v287 = vrot.slane %v286, 4
    %v288 = vadd.f32 %v286, %v287
    %v289 = vrot.slane %v288, 2
    %v290 = vadd.f32 %v288, %v289
    %v291 = vrot.slane %v290, 1
    %v292 = vadd.f32 %v290, %v291
    %v293 = vrcp.pop %v292
    %v294 = vmul.f32 %v285, %v293
    %296 = vset.pattern.permute.xlu0 0
    %297 = vperm.xlu0 %296, %v294
    %v298 = vpop.permute.xlu0 %297
    %v300 = vmul.f32 %v298, %v105
    %v301 = vsel %vm34, %v300, 0.0
    %v302 = vrot.slane %v301, 4
    %v303 = vadd.f32 %v301, %v302
    %v304 = vrot.slane %v303, 2
    %v305 = vadd.f32 %v303, %v304
    %v306 = vrot.slane %v305, 1
    %v307 = vadd.f32 %v305, %v306
    %v308 = vmax.f32 %v307, 0.0
    %v309 = vld [vmem:[%s7] sm:$0x1]
    %v310 = vld [vmem:[%s6] sm:$0xff]
    %v311 = vld [vmem:[%s6 + $0x8] sm:$0xff]
    %v313 = vsel %vm34, %v308, 0
    %315 = vmatprep.subr.mxu0 0.0
    %316 = vmatpush1.msra.mxu0 %v310
    %317 = vmatprep.subr.mxu0 0.0
    %318 = vmatpush1.msra.mxu0 %v311
    %319 = vmatprep.subr.mxu0 0.0
    %320 = vmatpush1.msra.mxu0 0.0
    %321 = vmatprep.subr.mxu0 0.0
    %322 = vmatpush1.msra.mxu0 0.0
    %323 = vmatprep.subr.mxu0 0.0
    %324 = vmatpush1.msra.mxu0 0.0
    %325 = vmatprep.subr.mxu0 0.0
    %326 = vmatpush1.msra.mxu0 0.0
    %327 = vmatprep.subr.mxu0 0.0
    %328 = vmatpush1.msra.mxu0 0.0
    %329 = vmatprep.subr.mxu0 0.0
    %330 = vmatpush1.msra.mxu0 0.0
    %331 = vmatprep.subr.mxu0 0.0
    %332 = vmatpush1.msra.mxu0 0.0
    %333 = vmatprep.subr.mxu0 0.0
    %334 = vmatpush1.msra.mxu0 0.0
    %335 = vmatprep.subr.mxu0 0.0
    %336 = vmatpush1.msra.mxu0 0.0
    %337 = vmatprep.subr.mxu0 0.0
    %338 = vmatpush1.msra.mxu0 0.0
    %339 = vmatprep.subr.mxu0 0.0
    %340 = vmatpush1.msra.mxu0 0.0
    %341 = vmatprep.subr.mxu0 0.0
    %342 = vmatpush1.msra.mxu0 0.0
    %343 = vmatprep.subr.mxu0 0.0
    %344 = vmatpush1.msra.mxu0 0.0
    %345 = vmatprep.subr.mxu0 0.0
    %346 = vmatpush1.msra.mxu0 0.0
    %347 = vmatprep.subr.mxu0 0.0
    %348 = vmatpush1.msra.mxu0 0.0
    %349 = vmatprep.subr.mxu0 0.0
    %350 = vmatpush1.msra.mxu0 0.0
    %351 = vmatprep.subr.mxu0 0.0
    %352 = vmatpush1.msra.mxu0 0.0
    %353 = vmatprep.subr.mxu0 0.0
    %354 = vmatpush1.msra.mxu0 0.0
    %355 = vmatprep.subr.mxu0 0.0
    %356 = vmatpush1.msra.mxu0 0.0
    %357 = vmatprep.subr.mxu0 0.0
    %358 = vmatpush1.msra.mxu0 0.0
    %359 = vmatprep.subr.mxu0 0.0
    %360 = vmatpush1.msra.mxu0 0.0
    %361 = vmatprep.subr.mxu0 0.0
    %362 = vmatpush1.msra.mxu0 0.0
    %363 = vmatprep.subr.mxu0 0.0
    %364 = vmatpush1.msra.mxu0 0.0
    %365 = vmatprep.subr.mxu0 0.0
    %366 = vmatpush1.msra.mxu0 0.0
    %367 = vmatprep.subr.mxu0 0.0
    %368 = vmatpush1.msra.mxu0 0.0
    %369 = vmatprep.subr.mxu0 0.0
    %370 = vmatpush1.msra.mxu0 0.0
    %371 = vmatprep.subr.mxu0 0.0
    %372 = vmatpush1.msra.mxu0 0.0
    %373 = vmatprep.subr.mxu0 0.0
    %374 = vmatpush1.msra.mxu0 0.0
    %375 = vmatprep.subr.mxu0 0.0
    %376 = vmatpush1.msra.mxu0 0.0
    %377 = vmatprep.subr.mxu0 0.0
    %378 = vmatpush1.msra.mxu0 0.0
    %379 = vmatprep.mubr.f32.mxu0 0.0
    %380 = vmatmul.mubr.f32.gmra.mrb[0].mxu0 %v313
    %v381 = vpop.f32.mrb[0].mxu0
    %v382 = vadd.f32 0.0, %v381
    %v383 = vpop.f32.mrb[0].mxu0
    %384 = vdwg.mxu0
    %v385 = vadd.f32 %v309, %v382
    %386 = vst [vmem:[#allocation3] sm:$0x1] %v385
    // Predicated region
    $region34: #{tpu_custom_call.1} parent=1 // pred_check
      _
    $region35: #{tpu_custom_call.1} parent=1 // pred_check_branch
      %388 = sbr.rel (0) target = $region37
    $region36: #{tpu_custom_call.1} parent=1 // pred_region
      %s390 = ssub.s32 16, 16
      %391 = vsyncadd [#allocation4], %s390
      %s393 = sshll.u32 [#allocation3], 4
      %s394 = int_to_ptr.vmem [resolvable:$true] %s393
      %396 = dma.vmem_to_hbm [thread:$0]  %s394, 16, %s8, [#allocation4]
    $region37: #{tpu_custom_call.1} parent=1 // pred_fallthru
      _
    // Predicated region
    $region38: #{tpu_custom_call.1} parent=1 // pred_check
      _
    $region39: #{tpu_custom_call.1} parent=1 // pred_check_branch
      %398 = sbr.rel (0) target = $region41
    $region40: #{tpu_custom_call.1} parent=1 // pred_region
      %399 = dma.done [#allocation4], 16
    $region41: #{tpu_custom_call.1} parent=1 // pred_fallthru
      _
    %400 = vsyncpa [#allocation4], 1

</llo_original>
